<compile_context>
chip_gen: v6e
topology: v6e:2x2x1
jax: 0.10.0
libtpu: 0.0.40
codegen_flags: <defaults>
</compile_context>

<pallas_src>
import functools
import math

import jax
import jax.numpy as jnp
from jax.experimental import pallas as pl
from jax.experimental.pallas import tpu as pltpu

# WingLoss constants (w=10, e=2), C = w - w*log(1 + w/e)
_W = 10.0
_E = 2.0
_C = _W - _W * math.log(1.0 + _W / _E)

_LANES = 128
_SUBLANES = 8


def _landmarks_loss_kernel(pred_ref, true_ref, mask_ref, out_ref,
                           wing_acc, mask_acc, *,
                           rows, tile_rows, steps_per_core):
    c = pl.program_id(0)   # which half of the rows (maps to a TC on v7x)
    i = pl.program_id(1)   # reduction step within this half

    @pl.when(i == 0)
    def _():
        wing_acc[...] = jnp.zeros_like(wing_acc)
        mask_acc[...] = jnp.zeros_like(mask_acc)

    # DMA moved native dtype; cast to f32 for the math.
    pred = pred_ref[...].astype(jnp.float32)
    tru = true_ref[...].astype(jnp.float32)
    msk = mask_ref[...].astype(jnp.float32)

    # Row-validity mask.  `blk` is the UNclamped global block index; rows at
    # or beyond `rows` (ragged tail of the last block, or the duplicated
    # clamped block when the block count is odd) are selected to 0 so they
    # contribute nothing to either sum.  NaN/Inf garbage cannot leak because
    # jnp.where is a vselect, not a multiply.
    blk = c * steps_per_core + i
    rows_left = rows - blk * tile_rows          # <= 0 for fully-invalid blocks
    row_ids = jax.lax.broadcasted_iota(jnp.int32, (tile_rows, _LANES), 0)
    valid = row_ids < rows_left

    # WingLoss(pred * mask, truel * mask); the weight (t == -1 -> 0) and the
    # validity mask are folded into selects.
    x = pred * msk
    t = tru * msk
    diff = jnp.where(t == -1.0, 0.0, x - t)
    abs_diff = jnp.abs(diff)
    y = jnp.where(abs_diff < _W,
                  _W * jnp.log1p(abs_diff * (1.0 / _E)),
                  abs_diff - _C)
    y = jnp.where(valid, y, 0.0)
    m = jnp.where(valid, msk, 0.0)

    # Vector partial sums: (tile_rows,128) -> (tile_rows//8, 8, 128) ->
    # leading-axis reduce (plain vreg adds on the VPU) into (8,128) scratch.
    wing_acc[...] += jnp.sum(
        y.reshape(tile_rows // _SUBLANES, _SUBLANES, _LANES), axis=0)
    mask_acc[...] += jnp.sum(
        m.reshape(tile_rows // _SUBLANES, _SUBLANES, _LANES), axis=0)

    @pl.when(i == steps_per_core - 1)
    def _():
        out_ref[0, 0] = wing_acc[...]
        out_ref[0, 1] = mask_acc[...]


def _round_up(x, m):
    return ((x + m - 1) // m) * m


def _cdiv(a, b):
    return -(-a // b)


def landmarks_loss(pred, truel, mask, alpha=1.0, max_tile_rows=4096):
    """Pallas TPU implementation of LandmarksLoss.forward.

    `alpha` is stored but unused by the PyTorch forward, so it is ignored.
    All three inputs must share a shape; any float (or bool/int mask) dtype is
    accepted and flows through the HBM->VMEM DMA in its native dtype.
    """
    del alpha
    assert pred.shape == truel.shape == mask.shape

    total = int(math.prod(pred.shape)) if pred.shape else 1
    rows = max(1, _cdiv(total, _LANES))
    padded_total = rows * _LANES

    def _prep(a):
        flat = a.reshape(-1)
        pad = padded_total - total
        if pad:
            # Zero padding is exact: pred=truel=mask=0 -> diff=0 -> wing=0 and
            # adds 0 to mask_sum.
            # TODO(synk): this <=127-element pad still costs one extra
            # read+write of the input; a fully zero-copy path for
            # total % 128 != 0 would require streaming the original narrow
            # layout, which is lane/DMA-inefficient.  When total % 128 == 0
            # the input reaches pallas_call as a pure bitcast reshape.
            flat = jnp.pad(flat, (0, pad))
        return flat.reshape(rows, _LANES)

    p2, t2, m2 = _prep(pred), _prep(truel), _prep(mask)

    # Balanced tiling: never round `rows` up to a whole tile -- partial tail
    # blocks are masked in-kernel instead.
    n_blocks_target = max(1, _cdiv(rows, max_tile_rows))
    tile_rows = max(_SUBLANES,
                    _round_up(_cdiv(rows, n_blocks_target), _SUBLANES))
    total_blocks = _cdiv(rows, tile_rows)
    steps_per_core = _cdiv(total_blocks, 2)
    last_block = total_blocks - 1

    kernel = functools.partial(_landmarks_loss_kernel,
                               rows=rows, tile_rows=tile_rows,
                               steps_per_core=steps_per_core)

    def in_map(c, i):
        # Clamp so the (at most one) duplicated grid step when total_blocks is
        # odd re-reads an in-bounds block; the kernel masks it to zero.
        return (jnp.minimum(c * steps_per_core + i, last_block), 0)

    in_spec = pl.BlockSpec((tile_rows, _LANES), in_map)
    out_spec = pl.BlockSpec((1, 2, _SUBLANES, _LANES), lambda c, i: (c, 0, 0, 0))

    partials = pl.pallas_call(
        kernel,
        out_shape=jax.ShapeDtypeStruct((2, 2, _SUBLANES, _LANES), jnp.float32),
        grid_spec=pltpu.PrefetchScalarGridSpec(
            num_scalar_prefetch=0,
            grid=(2, steps_per_core),
            in_specs=[in_spec, in_spec, in_spec],
            out_specs=out_spec,
            scratch_shapes=[pltpu.VMEM((_SUBLANES, _LANES), jnp.float32),
                            pltpu.VMEM((_SUBLANES, _LANES), jnp.float32)],
        ),
        compiler_params=pltpu.CompilerParams(
            dimension_semantics=("parallel", "arbitrary"),
            vmem_limit_bytes=32 * 1024 * 1024),
    )(p2, t2, m2)

    # Final tiny cross-core / cross-lane combine outside the kernel.
    wing_sum = jnp.sum(partials[:, 0])
    mask_sum = jnp.sum(partials[:, 1])
    return wing_sum / (mask_sum + 1e-13)


def _reference(pred, truel, mask):
    """Pure-JAX reference mirroring the PyTorch semantics (f32 math)."""
    pred = pred.astype(jnp.float32)
    truel = truel.astype(jnp.float32)
    mask = mask.astype(jnp.float32)
    x = pred * mask
    t = truel * mask
    weight = jnp.where(t == -1.0, 0.0, 1.0)
    diff = weight * (x - t)
    abs_diff = jnp.abs(diff)
    flag = (abs_diff < _W).astype(jnp.float32)
    y = flag * _W * jnp.log(1.0 + abs_diff / _E) + (1.0 - flag) * (abs_diff - _C)
    return jnp.sum(y) / (jnp.sum(mask) + 1e-13)


if __name__ == "__main__":
    key = jax.random.PRNGKey(0)
    k1, k2, k3, k4, k5, k6 = jax.random.split(key, 6)

    # --- Test 1: total % 128 == 0 -> zero-copy (bitcast-only) wrapper path,
    #     single block, partial-block row masking (5 rows < tile_rows=8). ----
    N1, K1 = 64, 10   # 64 targets x (5 landmarks * 2 coords)
    pred1 = jax.random.normal(k1, (N1, K1), dtype=jnp.float32) * 3.0
    true1 = jax.random.normal(k2, (N1, K1), dtype=jnp.float32) * 3.0
    vis1 = (jax.random.uniform(k3, (N1, 1)) > 0.3).astype(jnp.float32)
    mask1 = jnp.broadcast_to(vis1, (N1, K1)).astype(jnp.float32)

    loss1 = landmarks_loss(pred1, true1, mask1)
    jax.block_until_ready(loss1)
    ref1 = _reference(pred1, true1, mask1)
    assert jnp.allclose(loss1, ref1, rtol=1e-5, atol=1e-5), (loss1, ref1)

    # --- Test 2: non-multiple-of-128 total (minimal-pad path), odd block
    #     count (exercises the clamped duplicate grid step), multi-step
    #     accumulation on both halves of the parallel axis. ------------------
    N2, K2 = 300, 10
    pred2 = jax.random.normal(k4, (N2, K2), dtype=jnp.float32) * 5.0
    true2 = jax.random.normal(k5, (N2, K2), dtype=jnp.float32) * 5.0
    vis2 = (jax.random.uniform(k6, (N2, 1)) > 0.3).astype(jnp.float32)
    mask2 = jnp.broadcast_to(vis2, (N2, K2)).astype(jnp.float32)

    loss2 = landmarks_loss(pred2, true2, mask2, max_tile_rows=8)  # 3 blocks
    jax.block_until_ready(loss2)
    ref2 = _reference(pred2, true2, mask2)
    assert jnp.allclose(loss2, ref2, rtol=1e-5, atol=1e-5), (loss2, ref2)

    # --- Test 3: native bf16 inputs cross the DMA un-widened. ---------------
    loss3 = landmarks_loss(pred2.astype(jnp.bfloat16),
                           true2.astype(jnp.bfloat16),
                           mask2.astype(jnp.bfloat16))
    jax.block_until_ready(loss3)
    ref3 = _reference(pred2.astype(jnp.bfloat16),
                      true2.astype(jnp.bfloat16),
                      mask2.astype(jnp.bfloat16))
    assert jnp.allclose(loss3, ref3, rtol=2e-2, atol=2e-2), (loss3, ref3)

    print("KERNEL_OK")
</pallas_src>

<mosaic_0001>
module attributes {stable_mosaic.version = 11 : i64} {
  func.func @_landmarks_loss_kernel(%arg0: i32, %arg1: i32, %arg2: memref<8x128xf32, #tpu.memory_space<vmem>>, %arg3: memref<8x128xf32, #tpu.memory_space<vmem>>, %arg4: memref<8x128xf32, #tpu.memory_space<vmem>>, %arg5: memref<1x2x8x128xf32, #tpu.memory_space<vmem>>, %arg6: memref<8x128xf32, #tpu.memory_space<vmem>>, %arg7: memref<8x128xf32, #tpu.memory_space<vmem>>) attributes {dimension_semantics = [#tpu.dimension_semantics<parallel>, #tpu.dimension_semantics<arbitrary>], iteration_bounds = array<i64: 2, 1>, scalar_prefetch = 0 : i64, scratch_operands = 2 : i64, tpu.core_type = #tpu.core_type<tc>, window_params = [{transform_indices = @transform_0, window_bounds = array<i64: 8, 128>}, {transform_indices = @transform_1, window_bounds = array<i64: 8, 128>}, {transform_indices = @transform_2, window_bounds = array<i64: 8, 128>}, {transform_indices = @transform_3, window_bounds = array<i64: 1, 2, 8, 128>}]} {
    %c0_i32 = arith.constant 0 : i32
    %0 = arith.cmpi eq, %arg1, %c0_i32 : i32
    %1 = arith.extui %0 : i1 to i32
    %c0_i32_0 = arith.constant 0 : i32
    %2 = arith.cmpi ne, %1, %c0_i32_0 : i32
    scf.if %2 {
      %cst_25 = arith.constant 0.000000e+00 : f32
      %48 = vector.broadcast %cst_25 : f32 to vector<8x128xf32>
      %c0_26 = arith.constant 0 : index
      %c0_27 = arith.constant 0 : index
      %49 = vector.load %arg6[%c0_26, %c0_27] : memref<8x128xf32, #tpu.memory_space<vmem>>, vector<8x128xf32>
      tpu.vector_store %arg6[%c0_26, %c0_27], %48 {strides = array<i32>} : memref<8x128xf32, #tpu.memory_space<vmem>>, vector<8x128xf32>,
      %cst_28 = arith.constant 0.000000e+00 : f32
      %50 = vector.broadcast %cst_28 : f32 to vector<8x128xf32>
      %c0_29 = arith.constant 0 : index
      %c0_30 = arith.constant 0 : index
      %51 = vector.load %arg7[%c0_29, %c0_30] : memref<8x128xf32, #tpu.memory_space<vmem>>, vector<8x128xf32>
      tpu.vector_store %arg7[%c0_29, %c0_30], %50 {strides = array<i32>} : memref<8x128xf32, #tpu.memory_space<vmem>>, vector<8x128xf32>,
    } else {
    }
    %c0 = arith.constant 0 : index
    %c0_1 = arith.constant 0 : index
    %3 = vector.load %arg2[%c0, %c0_1] : memref<8x128xf32, #tpu.memory_space<vmem>>, vector<8x128xf32>
    %c0_2 = arith.constant 0 : index
    %c0_3 = arith.constant 0 : index
    %4 = vector.load %arg3[%c0_2, %c0_3] : memref<8x128xf32, #tpu.memory_space<vmem>>, vector<8x128xf32>
    %c0_4 = arith.constant 0 : index
    %c0_5 = arith.constant 0 : index
    %5 = vector.load %arg4[%c0_4, %c0_5] : memref<8x128xf32, #tpu.memory_space<vmem>>, vector<8x128xf32>
    %c1_i32 = arith.constant 1 : i32
    %6 = arith.muli %arg0, %c1_i32 : i32
    %7 = arith.addi %6, %arg1 : i32
    %c8_i32 = arith.constant 8 : i32
    %8 = arith.muli %7, %c8_i32 : i32
    %c5_i32 = arith.constant 5 : i32
    %9 = arith.subi %c5_i32, %8 : i32
    %10 = tpu.iota {dimensions = array<i32: 0>} : vector<8x128xi32>
    %11 = vector.broadcast %9 : i32 to vector<8x128xi32>
    %12 = arith.cmpi slt, %10, %11 : vector<8x128xi32>
    %13 = arith.mulf %3, %5 : vector<8x128xf32>
    %14 = arith.mulf %4, %5 : vector<8x128xf32>
    %cst = arith.constant -1.000000e+00 : f32
    %15 = vector.broadcast %cst : f32 to vector<8x128xf32>
    %16 = arith.cmpf oeq, %14, %15 : vector<8x128xf32>
    %17 = arith.subf %13, %14 : vector<8x128xf32>
    %cst_6 = arith.constant 0.000000e+00 : f32
    %18 = vector.broadcast %cst_6 : f32 to vector<8x128xf32>
    %19 = arith.select %16, %18, %17 : vector<8x128xi1>, vector<8x128xf32>
    %20 = math.absf %19 : vector<8x128xf32>
    %cst_7 = arith.constant 1.000000e+01 : f32
    %21 = vector.broadcast %cst_7 : f32 to vector<8x128xf32>
    %22 = arith.cmpf olt, %20, %21 : vector<8x128xf32>
    %cst_8 = arith.constant 5.000000e-01 : f32
    %23 = vector.broadcast %cst_8 : f32 to vector<8x128xf32>
    %24 = arith.mulf %20, %23 : vector<8x128xf32>
    %25 = math.log1p %24 : vector<8x128xf32>
    %cst_9 = arith.constant 1.000000e+01 : f32
    %26 = vector.broadcast %cst_9 : f32 to vector<8x128xf32>
    %27 = arith.mulf %26, %25 : vector<8x128xf32>
    %cst_10 = arith.constant -7.9175949 : f32
    %28 = vector.broadcast %cst_10 : f32 to vector<8x128xf32>
    %29 = arith.subf %20, %28 : vector<8x128xf32>
    %30 = arith.select %22, %27, %29 : vector<8x128xi1>, vector<8x128xf32>
    %cst_11 = arith.constant 0.000000e+00 : f32
    %31 = vector.broadcast %cst_11 : f32 to vector<8x128xf32>
    %32 = arith.select %12, %30, %31 : vector<8x128xi1>, vector<8x128xf32>
    %cst_12 = arith.constant 0.000000e+00 : f32
    %33 = vector.broadcast %cst_12 : f32 to vector<8x128xf32>
    %34 = arith.select %12, %5, %33 : vector<8x128xi1>, vector<8x128xf32>
    %c0_13 = arith.constant 0 : index
    %c0_14 = arith.constant 0 : index
    %35 = vector.load %arg6[%c0_13, %c0_14] : memref<8x128xf32, #tpu.memory_space<vmem>>, vector<8x128xf32>
    %36 = vector.shape_cast %32 : vector<8x128xf32> to vector<1x8x128xf32>
    %cst_15 = arith.constant dense<0.000000e+00> : vector<8x128xf32>
    %37 = vector.multi_reduction <add>, %36, %cst_15 [0] : vector<1x8x128xf32> to vector<8x128xf32>
    %38 = arith.addf %35, %37 : vector<8x128xf32>
    %c0_16 = arith.constant 0 : index
    %c0_17 = arith.constant 0 : index
    %39 = vector.load %arg6[%c0_16, %c0_17] : memref<8x128xf32, #tpu.memory_space<vmem>>, vector<8x128xf32>
    tpu.vector_store %arg6[%c0_16, %c0_17], %38 {strides = array<i32>} : memref<8x128xf32, #tpu.memory_space<vmem>>, vector<8x128xf32>,
    %c0_18 = arith.constant 0 : index
    %c0_19 = arith.constant 0 : index
    %40 = vector.load %arg7[%c0_18, %c0_19] : memref<8x128xf32, #tpu.memory_space<vmem>>, vector<8x128xf32>
    %41 = vector.shape_cast %34 : vector<8x128xf32> to vector<1x8x128xf32>
    %cst_20 = arith.constant dense<0.000000e+00> : vector<8x128xf32>
    %42 = vector.multi_reduction <add>, %41, %cst_20 [0] : vector<1x8x128xf32> to vector<8x128xf32>
    %43 = arith.addf %40, %42 : vector<8x128xf32>
    %c0_21 = arith.constant 0 : index
    %c0_22 = arith.constant 0 : index
    %44 = vector.load %arg7[%c0_21, %c0_22] : memref<8x128xf32, #tpu.memory_space<vmem>>, vector<8x128xf32>
    tpu.vector_store %arg7[%c0_21, %c0_22], %43 {strides = array<i32>} : memref<8x128xf32, #tpu.memory_space<vmem>>, vector<8x128xf32>,
    %c0_i32_23 = arith.constant 0 : i32
    %45 = arith.cmpi eq, %arg1, %c0_i32_23 : i32
    %46 = arith.extui %45 : i1 to i32
    %c0_i32_24 = arith.constant 0 : i32
    %47 = arith.cmpi ne, %46, %c0_i32_24 : i32
    scf.if %47 {
      %c0_25 = arith.constant 0 : index
      %c0_26 = arith.constant 0 : index
      %48 = vector.load %arg6[%c0_25, %c0_26] : memref<8x128xf32, #tpu.memory_space<vmem>>, vector<8x128xf32>
      %c0_27 = arith.constant 0 : index
      %c0_28 = arith.constant 0 : index
      %c0_29 = arith.constant 0 : index
      %c0_30 = arith.constant 0 : index
      %49 = vector.load %arg5[%c0_27, %c0_28, %c0_29, %c0_30] : memref<1x2x8x128xf32, #tpu.memory_space<vmem>>, vector<1x1x8x128xf32>
      %50 = vector.shape_cast %49 : vector<1x1x8x128xf32> to vector<8x128xf32>
      %51 = vector.shape_cast %48 : vector<8x128xf32> to vector<1x1x8x128xf32>
      tpu.vector_store %arg5[%c0_27, %c0_28, %c0_29, %c0_30], %51 {strides = array<i32>} : memref<1x2x8x128xf32, #tpu.memory_space<vmem>>, vector<1x1x8x128xf32>,
      %c0_31 = arith.constant 0 : index
      %c0_32 = arith.constant 0 : index
      %52 = vector.load %arg7[%c0_31, %c0_32] : memref<8x128xf32, #tpu.memory_space<vmem>>, vector<8x128xf32>
      %c0_33 = arith.constant 0 : index
      %c1 = arith.constant 1 : index
      %c0_34 = arith.constant 0 : index
      %c0_35 = arith.constant 0 : index
      %53 = vector.load %arg5[%c0_33, %c1, %c0_34, %c0_35] : memref<1x2x8x128xf32, #tpu.memory_space<vmem>>, vector<1x1x8x128xf32>
      %54 = vector.shape_cast %53 : vector<1x1x8x128xf32> to vector<8x128xf32>
      %55 = vector.shape_cast %52 : vector<8x128xf32> to vector<1x1x8x128xf32>
      tpu.vector_store %arg5[%c0_33, %c1, %c0_34, %c0_35], %55 {strides = array<i32>} : memref<1x2x8x128xf32, #tpu.memory_space<vmem>>, vector<1x1x8x128xf32>,
    } else {
    }
    return
  }
  func.func @transform_0(%arg0: i32, %arg1: i32) -> (i32, i32) {
    %c1_i32 = arith.constant 1 : i32
    %0 = arith.muli %arg0, %c1_i32 : i32
    %1 = arith.addi %0, %arg1 : i32
    %c0_i32 = arith.constant 0 : i32
    %2 = arith.minsi %1, %c0_i32 : i32
    %c0_i32_0 = arith.constant 0 : i32
    %c0_i32_1 = arith.constant 0 : i32
    return %2, %c0_i32_0 : i32, i32
  }
  func.func @transform_1(%arg0: i32, %arg1: i32) -> (i32, i32) {
    %c1_i32 = arith.constant 1 : i32
    %0 = arith.muli %arg0, %c1_i32 : i32
    %1 = arith.addi %0, %arg1 : i32
    %c0_i32 = arith.constant 0 : i32
    %2 = arith.minsi %1, %c0_i32 : i32
    %c0_i32_0 = arith.constant 0 : i32
    %c0_i32_1 = arith.constant 0 : i32
    return %2, %c0_i32_0 : i32, i32
  }
  func.func @transform_2(%arg0: i32, %arg1: i32) -> (i32, i32) {
    %c1_i32 = arith.constant 1 : i32
    %0 = arith.muli %arg0, %c1_i32 : i32
    %1 = arith.addi %0, %arg1 : i32
    %c0_i32 = arith.constant 0 : i32
    %2 = arith.minsi %1, %c0_i32 : i32
    %c0_i32_0 = arith.constant 0 : i32
    %c0_i32_1 = arith.constant 0 : i32
    return %2, %c0_i32_0 : i32, i32
  }
  func.func @transform_3(%arg0: i32, %arg1: i32) -> (i32, i32, i32, i32) {
    %c0_i32 = arith.constant 0 : i32
    %c0_i32_0 = arith.constant 0 : i32
    %c0_i32_1 = arith.constant 0 : i32
    %c0_i32_2 = arith.constant 0 : i32
    return %arg0, %c0_i32, %c0_i32_0, %c0_i32_1 : i32, i32, i32, i32
  }
}

</mosaic_0001>

<llo_original>
// kernel: tpu_custom_call.1
$region0: #{tpu_custom_call.1}
  #allocation0 [shape = 'u32[]', space=smem, size = 0x4, offset = 0x4, fixed_abs, tag = 'smem constant byte address 0x4 - core index']
  #allocation1 [shape = 'u32[144,128]{1,0:T(1,128)}', space=vmem, size = 0x12000, scoped, tag = 'internal scratch']
  #allocation2 [shape = 'f32[8,128]{1,0:T(8,128)}', space=vmem, size = 0x1000, scoped, tag = 'scratch operand']
  #allocation3 [shape = 'f32[8,128]{1,0:T(8,128)}', space=vmem, size = 0x1000, scoped, tag = 'scratch operand']
  %s0 = inlined_call_operand.hbm [shape: f32[5,128], index: 0, kind: input, shape index: {}]
  %s1 = inlined_call_operand.hbm [shape: f32[5,128], index: 1, kind: input, shape index: {}]
  %s2 = inlined_call_operand.hbm [shape: f32[5,128], index: 2, kind: input, shape index: {}]
  %s3 = inlined_call_operand.hbm [shape: f32[2,2,8,128], index: 3, kind: output, shape index: {}]
  %s4 = sld [smem:[#allocation0]]
  $region65: #{tpu_custom_call.1} parent=0
    _
  %s6 = ssub.s32 1, %s4
  %s7 = scalar_select 0, %s6, %s4
  $region1: #{tpu_custom_call.1} parent=0
    #allocation4 [shape = 'u8[8192]{0}', space=vmem, size = 0x2000, scoped, tag = 'input window, operand 0']
    #allocation5 [shape = 's32[2]{0}', space=sflag, size = 0x8, scoped, tag = 'scoped memory for tpu_custom_call.1']
    #allocation6 [shape = 's32[2]{0}', space=sflag, size = 0x8, scoped, tag = 'scoped memory for tpu_custom_call.1']
    #allocation7 [shape = 'u8[8192]{0}', space=vmem, size = 0x2000, scoped, tag = 'input window, operand 1']
    #allocation8 [shape = 's32[2]{0}', space=sflag, size = 0x8, scoped, tag = 'scoped memory for tpu_custom_call.1']
    #allocation9 [shape = 'u8[8192]{0}', space=vmem, size = 0x2000, scoped, tag = 'input window, operand 2']
    #allocation10 [shape = 'u8[16384]{0}', space=vmem, size = 0x4000, scoped, tag = 'output window, operand 0']
    %8 = vsyncpa [#allocation5], 0
    %s9 = scalar_lea.sflag [#allocation5], 1
    %10 = vsyncpa %s9, 0
    %11 = vsyncpa [#allocation8], 0
    %s12 = scalar_lea.sflag [#allocation8], 1
    %13 = vsyncpa %s12, 0
    %14 = vsyncpa [#allocation6], 0
    %s15 = scalar_lea.sflag [#allocation6], 1
    %16 = vsyncpa %s15, 0
    loop: start=0, step=1, limit=4
    $region2: #{tpu_custom_call.1} parent=1 // loop_pre_header
      _
    $region3: #{tpu_custom_call.1} parent=1 // loop_header
      %s18 = sphi 0, %s22
      %p19 = scmp.ge.s32.totalorder %s18, 4
      %s25 = sphi 0, %s37
      %s26 = sphi 0, %s33
      %s27 = sphi 0, %s25
      %s28 = sphi 0, %s26
      %s29 = sphi 0, %s27
      %s30 = sphi 0, %s28
      %s46 = sphi 0, %s48
      %s49 = sphi 0, %s46
      %s50 = sphi 0, %s49
      %s66 = sphi 0, %s50
      %s78 = sphi 0, %s80
      %s81 = sphi 0, %s78
      %s82 = sphi 0, %s81
      %s98 = sphi 0, %s82
      %s110 = sphi 0, %s112
      %s113 = sphi 0, %s110
      %s114 = sphi 0, %s113
      %s130 = sphi 0, %s114
      %s136 = sphi 0, %s138
      %s139 = sphi 0, %s136
      %s140 = sphi 0, %s139
      %s156 = sphi 0, %s140
    $region4: #{tpu_custom_call.1} parent=1 // loop_header_branch
      %21 = sbr.rel (%p19) target = $region8
    $region5: #{tpu_custom_call.1} parent=1 // loop_body
      %s23 = ssub.s32 %s18, 1
      %s24 = ssub.s32 %s18, 2
      %s31 = sadd.s32 1, %s26
      %p32 = scmp.ge.s32.totalorder %s31, 1
      %s33 = scalar_select %p32, 0, %s31
      %s34 = sadd.s32 1, %s25
      %s35 = scalar_select %p32, %s34, %s25
      %p36 = scmp.ge.s32.totalorder %s35, 2
      %s37 = scalar_select %p36, 0, %s35
      %s38 = sadd.s32 %s25, %s26
      %p39 = scmp.lt.s32.totalorder %s38, 0
      %s40 = scalar_select %p39, %s38, 0
      %s41 = sadd.s32 %s37, %s33
      %p42 = scmp.lt.s32.totalorder %s41, 0
      %s43 = scalar_select %p42, %s41, 0
      %s44 = ssub.s32 %s40, %s43
      %p45 = scmp.eq.s32.totalorder %s44, 0
      %s47 = sadd.s32 %s46, 1
      %s48 = scalar_select %p45, %s46, %s47
      %p51 = pneg %p45
      %p52 = scmp.eq.s32.totalorder %s18, 1
      %p53 = por %p51, %p52
      %p54 = scmp.ne.s32.totalorder %s46, %s49
      %p55 = scmp.eq.s32.totalorder %s18, 0
      %p56 = por %p54, %p55
      %p57 = scmp.ne.s32.totalorder %s46, %s49
      %p58 = scmp.eq.s32.totalorder %s23, 1
      %p59 = por %p57, %p58
      %p60 = scmp.ne.s32.totalorder %s49, %s50
      %p61 = scmp.eq.s32.totalorder %s23, 0
      %p62 = por %p60, %p61
      %p63 = scmp.ne.s32.totalorder %s49, %s50
      %p64 = scmp.eq.s32.totalorder %s24, 1
      %p65 = por %p63, %p64
      %p67 = scmp.ne.s32.totalorder %s50, %s66
      %p68 = scmp.eq.s32.totalorder %s24, 0
      %p69 = por %p67, %p68
      %s70 = sadd.s32 %s25, %s26
      %p71 = scmp.lt.s32.totalorder %s70, 0
      %s72 = scalar_select %p71, %s70, 0
      %s73 = sadd.s32 %s37, %s33
      %p74 = scmp.lt.s32.totalorder %s73, 0
      %s75 = scalar_select %p74, %s73, 0
      %s76 = ssub.s32 %s72, %s75
      %p77 = scmp.eq.s32.totalorder %s76, 0
      %s79 = sadd.s32 %s78, 1
      %s80 = scalar_select %p77, %s78, %s79
      %p83 = pneg %p77
      %p84 = scmp.eq.s32.totalorder %s18, 1
      %p85 = por %p83, %p84
      %p86 = scmp.ne.s32.totalorder %s78, %s81
      %p87 = scmp.eq.s32.totalorder %s18, 0
      %p88 = por %p86, %p87
      %p89 = scmp.ne.s32.totalorder %s78, %s81
      %p90 = scmp.eq.s32.totalorder %s23, 1
      %p91 = por %p89, %p90
      %p92 = scmp.ne.s32.totalorder %s81, %s82
      %p93 = scmp.eq.s32.totalorder %s23, 0
      %p94 = por %p92, %p93
      %p95 = scmp.ne.s32.totalorder %s81, %s82
      %p96 = scmp.eq.s32.totalorder %s24, 1
      %p97 = por %p95, %p96
      %p99 = scmp.ne.s32.totalorder %s82, %s98
      %p100 = scmp.eq.s32.totalorder %s24, 0
      %p101 = por %p99, %p100
      %s102 = sadd.s32 %s25, %s26
      %p103 = scmp.lt.s32.totalorder %s102, 0
      %s104 = scalar_select %p103, %s102, 0
      %s105 = sadd.s32 %s37, %s33
      %p106 = scmp.lt.s32.totalorder %s105, 0
      %s107 = scalar_select %p106, %s105, 0
      %s108 = ssub.s32 %s104, %s107
      %p109 = scmp.eq.s32.totalorder %s108, 0
      %s111 = sadd.s32 %s110, 1
      %s112 = scalar_select %p109, %s110, %s111
      %p115 = pneg %p109
      %p116 = scmp.eq.s32.totalorder %s18, 1
      %p117 = por %p115, %p116
      %p118 = scmp.ne.s32.totalorder %s110, %s113
      %p119 = scmp.eq.s32.totalorder %s18, 0
      %p120 = por %p118, %p119
      %p121 = scmp.ne.s32.totalorder %s110, %s113
      %p122 = scmp.eq.s32.totalorder %s23, 1
      %p123 = por %p121, %p122
      %p124 = scmp.ne.s32.totalorder %s113, %s114
      %p125 = scmp.eq.s32.totalorder %s23, 0
      %p126 = por %p124, %p125
      %p127 = scmp.ne.s32.totalorder %s113, %s114
      %p128 = scmp.eq.s32.totalorder %s24, 1
      %p129 = por %p127, %p128
      %p131 = scmp.ne.s32.totalorder %s114, %s130
      %p132 = scmp.eq.s32.totalorder %s24, 0
      %p133 = por %p131, %p132
      %s134 = ssub.s32 %s25, %s37
      %p135 = scmp.eq.s32.totalorder %s134, 0
      %s137 = sadd.s32 %s136, 1
      %s138 = scalar_select %p135, %s136, %s137
      %p141 = pneg %p135
      %p142 = scmp.eq.s32.totalorder %s18, 1
      %p143 = por %p141, %p142
      %p144 = scmp.ne.s32.totalorder %s136, %s139
      %p145 = scmp.eq.s32.totalorder %s18, 0
      %p146 = por %p144, %p145
      %p147 = scmp.ne.s32.totalorder %s136, %s139
      %p148 = scmp.eq.s32.totalorder %s23, 1
      %p149 = por %p147, %p148
      %p150 = scmp.ne.s32.totalorder %s139, %s140
      %p151 = scmp.eq.s32.totalorder %s23, 0
      %p152 = por %p150, %p151
      %p153 = scmp.ne.s32.totalorder %s139, %s140
      %p154 = scmp.eq.s32.totalorder %s24, 1
      %p155 = por %p153, %p154
      %p157 = scmp.ne.s32.totalorder %s140, %s156
      %p158 = scmp.eq.s32.totalorder %s24, 0
      %p159 = por %p157, %p158
      %p160 = scmp.le.s32.totalorder 1, %s18
      %p161 = scmp.lt.s32.totalorder %s18, 3
      %p162 = pnand %p160, %p161
      %p163 = pneg %p162
      // Predicated region
      $region9: #{tpu_custom_call.1} parent=5 // pred_check
        _
      $region10: #{tpu_custom_call.1} parent=5 // pred_check_branch
        %165 = sbr.rel (%p162) target = $region12
      $region11: #{tpu_custom_call.1} parent=5 // pred_region
        %s166 = ssub.s32 %s18, 1
      $region12: #{tpu_custom_call.1} parent=5 // pred_fallthru
        _
      %p167 = scmp.lt.s32.totalorder %s18, 2
      // Predicated region
      $region13: #{tpu_custom_call.1} parent=5 // pred_check
        %p168 = pneg %p167
      $region14: #{tpu_custom_call.1} parent=5 // pred_check_branch
        %170 = sbr.rel (%p168) target = $region16
      $region15: #{tpu_custom_call.1} parent=5 // pred_region
        // Predicated region
        $region17: #{tpu_custom_call.1} parent=15 // pred_check
          %p171 = pneg %p56
        $region18: #{tpu_custom_call.1} parent=15 // pred_check_branch
          %173 = sbr.rel (%p171) target = $region20
        $region19: #{tpu_custom_call.1} parent=15 // pred_region
          %s174 = sand.u32 %s46, 1
          %s175 = scalar_lea.sflag [#allocation5], %s174
          %s176 = sand.u32 %s46, 1
          %s177 = smul.addr %s176, 8
          %s178 = scalar_lea.vmem [#allocation4], %s177
          %s179 = sadd.s32 %s25, %s26
          %p180 = scmp.lt.s32.totalorder %s179, 0
          %s181 = scalar_select %p180, %s179, 0
          %s183 = ssub.s32 128, 128
          %184 = vsyncadd %s175, %s183
          %s185 = smul.addr %s181, 128
          %s186 = scalar_lea.hbm %s0, %s185
          %s188 = sshll.u32 %s178, 4
          %s189 = int_to_ptr.vmem [resolvable:$true] %s188
          %191 = dma.hbm_to_vmem [thread:$0]  %s186, 128, %s189, %s175
        $region20: #{tpu_custom_call.1} parent=15 // pred_fallthru
          _
        // Predicated region
        $region21: #{tpu_custom_call.1} parent=15 // pred_check
          %p192 = pneg %p88
        $region22: #{tpu_custom_call.1} parent=15 // pred_check_branch
          %194 = sbr.rel (%p192) target = $region24
        $region23: #{tpu_custom_call.1} parent=15 // pred_region
          %s195 = sand.u32 %s18, 1
          %s196 = scalar_lea.sflag [#allocation8], %s195
          %s197 = sand.u32 %s78, 1
          %s198 = smul.addr %s197, 8
          %s199 = scalar_lea.vmem [#allocation7], %s198
          %s200 = sadd.s32 %s25, %s26
          %p201 = scmp.lt.s32.totalorder %s200, 0
          %s202 = scalar_select %p201, %s200, 0
          %s204 = ssub.s32 128, 128
          %205 = vsyncadd %s196, %s204
          %s206 = smul.addr %s202, 128
          %s207 = scalar_lea.hbm %s1, %s206
          %s209 = sshll.u32 %s199, 4
          %s210 = int_to_ptr.vmem [resolvable:$true] %s209
          %212 = dma.hbm_to_vmem [thread:$0]  %s207, 128, %s210, %s196
        $region24: #{tpu_custom_call.1} parent=15 // pred_fallthru
          _
        // Predicated region
        $region25: #{tpu_custom_call.1} parent=15 // pred_check
          %p213 = pneg %p120
        $region26: #{tpu_custom_call.1} parent=15 // pred_check_branch
          %215 = sbr.rel (%p213) target = $region28
        $region27: #{tpu_custom_call.1} parent=15 // pred_region
          %s216 = sand.u32 %s18, 1
          %s217 = scalar_lea.sflag [#allocation8], %s216
          %s218 = sand.u32 %s110, 1
          %s219 = smul.addr %s218, 8
          %s220 = scalar_lea.vmem [#allocation9], %s219
          %s221 = sadd.s32 %s25, %s26
          %p222 = scmp.lt.s32.totalorder %s221, 0
          %s223 = scalar_select %p222, %s221, 0
          %s225 = ssub.s32 128, 128
          %226 = vsyncadd %s217, %s225
          %s227 = smul.addr %s223, 128
          %s228 = scalar_lea.hbm %s2, %s227
          %s230 = sshll.u32 %s220, 4
          %s231 = int_to_ptr.vmem [resolvable:$true] %s230
          %233 = dma.hbm_to_vmem [thread:$0]  %s228, 128, %s231, %s217
        $region28: #{tpu_custom_call.1} parent=15 // pred_fallthru
          _
      $region16: #{tpu_custom_call.1} parent=5 // pred_fallthru
        _
      %p234 = scmp.le.s32.totalorder 1, %s18
      %p235 = scmp.lt.s32.totalorder %s18, 3
      %p236 = pnand %p234, %p235
      %p237 = pneg %p236
      // Predicated region
      $region29: #{tpu_custom_call.1} parent=5 // pred_check
        _
      $region30: #{tpu_custom_call.1} parent=5 // pred_check_branch
        %239 = sbr.rel (%p236) target = $region32
      $region31: #{tpu_custom_call.1} parent=5 // pred_region
        %s240 = ssub.s32 %s18, 1
        %s241 = sand.u32 %s49, 1
        %s242 = scalar_lea.sflag [#allocation5], %s241
        %s243 = sand.u32 %s49, 1
        %s244 = smul.addr %s243, 8
        %s245 = scalar_lea.vmem [#allocation4], %s244
        // Predicated region
        $region33: #{tpu_custom_call.1} parent=31 // pred_check
          %p246 = pneg %p62
        $region34: #{tpu_custom_call.1} parent=31 // pred_check_branch
          %248 = sbr.rel (%p246) target = $region36
        $region35: #{tpu_custom_call.1} parent=31 // pred_region
          %249 = dma.done %s242, 128
        $region36: #{tpu_custom_call.1} parent=31 // pred_fallthru
          _
        %s250 = sand.u32 %s23, 1
        %s251 = scalar_lea.sflag [#allocation8], %s250
        %s252 = sand.u32 %s81, 1
        %s253 = smul.addr %s252, 8
        %s254 = scalar_lea.vmem [#allocation7], %s253
        // Predicated region
        $region37: #{tpu_custom_call.1} parent=31 // pred_check
          %p255 = pneg %p94
        $region38: #{tpu_custom_call.1} parent=31 // pred_check_branch
          %257 = sbr.rel (%p255) target = $region40
        $region39: #{tpu_custom_call.1} parent=31 // pred_region
          %258 = dma.done %s251, 128
        $region40: #{tpu_custom_call.1} parent=31 // pred_fallthru
          _
        %s259 = sand.u32 %s23, 1
        %s260 = scalar_lea.sflag [#allocation8], %s259
        %s261 = sand.u32 %s113, 1
        %s262 = smul.addr %s261, 8
        %s263 = scalar_lea.vmem [#allocation9], %s262
        // Predicated region
        $region41: #{tpu_custom_call.1} parent=31 // pred_check
          %p264 = pneg %p126
        $region42: #{tpu_custom_call.1} parent=31 // pred_check_branch
          %266 = sbr.rel (%p264) target = $region44
        $region43: #{tpu_custom_call.1} parent=31 // pred_region
          %267 = dma.done %s260, 128
        $region44: #{tpu_custom_call.1} parent=31 // pred_fallthru
          _
        %s268 = sand.u32 %s49, 1
        %s269 = scalar_lea.sflag [#allocation5], %s268
        %s270 = sand.u32 %s49, 1
        %s271 = smul.addr %s270, 8
        %s272 = scalar_lea.vmem [#allocation4], %s271
        %p273 = pneg %p62
        %p274 = pneg %p59
        %s275 = sand.u32 %s23, 1
        %s276 = scalar_lea.sflag [#allocation8], %s275
        %s277 = sand.u32 %s81, 1
        %s278 = smul.addr %s277, 8
        %s279 = scalar_lea.vmem [#allocation7], %s278
        %p280 = pneg %p94
        %p281 = pneg %p91
        %s282 = sand.u32 %s23, 1
        %s283 = scalar_lea.sflag [#allocation8], %s282
        %s284 = sand.u32 %s113, 1
        %s285 = smul.addr %s284, 8
        %s286 = scalar_lea.vmem [#allocation9], %s285
        %p287 = pneg %p126
        %p288 = pneg %p123
        %p289 = pneg %p152
        %p290 = pneg %p149
        %s291 = sand.u32 %s139, 1
        %s292 = scalar_lea.sflag [#allocation6], %s291
        %s293 = sand.u32 %s139, 1
        %s294 = smul.addr %s293, 16
        %s295 = scalar_lea.vmem [#allocation10], %s294
        %s296 = sadd.s32 %s27, %s28
        %p297 = scmp.lt.s32.totalorder %s296, 0
        %s298 = scalar_select %p297, %s296, 0
        %s299 = sadd.s32 %s27, %s28
        %p300 = scmp.lt.s32.totalorder %s299, 0
        %s301 = scalar_select %p300, %s299, 0
        %s302 = sadd.s32 %s27, %s28
        %p303 = scmp.lt.s32.totalorder %s302, 0
        %s304 = scalar_select %p303, %s302, 0
        %p305 = scmp.eq.s32.totalorder %s28, 0
        // Predicated region
        $region45: #{tpu_custom_call.1} parent=31 // pred_check
          %p306 = pneg %p305
        $region46: #{tpu_custom_call.1} parent=31 // pred_check_branch
          %308 = sbr.rel (%p306) target = $region48
        $region47: #{tpu_custom_call.1} parent=31 // pred_region
          %309 = vst [vmem:[#allocation2] sm:$0xff] 0.0
          %310 = vst [vmem:[#allocation3] sm:$0xff] 0.0
        $region48: #{tpu_custom_call.1} parent=31 // pred_fallthru
          _
        %v311 = vld [vmem:[%s245] sm:$0xff]
        %v312 = vld [vmem:[%s254] sm:$0xff]
        %v313 = vld [vmem:[%s263] sm:$0xff]
        %s314 = sadd.s32 %s27, %s28
        %s315 = smul.u32 %s314, 8
        %s316 = ssub.s32 5, %s315
        %v317 = vlaneseq
        %v318 = vshrl.u32 %v317, 7
        %v319 = vstv %s316
        %vm320 = vcmp.lt.s32.totalorder %v318, %v319
        %v321 = vmul.f32 %v311, %v313
        %v322 = vmul.f32 %v312, %v313
        %vm323 = vcmp.eq.f32.partialorder %v322, -1.0
        %v324 = vsub.f32 %v321, %v322
        %v325 = vsel %vm323, 0.0, %v324
        %v326 = vand.u32 2147483647, %v325
        %vm327 = vcmp.lt.f32.partialorder %v326, 10.0
        %v328 = vmul.f32 %v326, 0.5
        %v329 = vadd.f32 %v328, 1.0
        %v330 = vlog2.pop %v329
        %v331 = vmul.f32 %v330, 0.6931472
        %v332 = vmul.f32 -0.5, %v328
        %v333 = vadd.f32 %v332, 1.0
        %v334 = vmul.f32 %v333, %v328
        %v335 = vand.u32 2147483647, %v328
        %vm336 = vcmp.lt.f32.partialorder %v335, 0.0004427343
        %v337 = vsel %vm336, %v334, %v331
        %v338 = vmul.f32 %v337, 10.0
        %v339 = vsub.f32 %v326, -7.917595
        %v340 = vsel %vm327, %v338, %v339
        %v341 = vsel %vm320, %v340, 0.0
        %v342 = vsel %vm320, %v313, 0.0
        %v343 = vld [vmem:[#allocation2] sm:$0xff]
        %v344 = vadd.f32 %v341, 0.0
        %v345 = vadd.f32 %v343, %v344
        %346 = vst [vmem:[#allocation2] sm:$0xff] %v345
        %v347 = vld [vmem:[#allocation3] sm:$0xff]
        %v348 = vadd.f32 %v342, 0.0
        %v349 = vadd.f32 %v347, %v348
        %350 = vst [vmem:[#allocation3] sm:$0xff] %v349
        // Predicated region
        $region49: #{tpu_custom_call.1} parent=31 // pred_check
          %p351 = pneg %p305
        $region50: #{tpu_custom_call.1} parent=31 // pred_check_branch
          %353 = sbr.rel (%p351) target = $region52
        $region51: #{tpu_custom_call.1} parent=31 // pred_region
          %v354 = vld [vmem:[#allocation2] sm:$0xff]
          %355 = vst [vmem:[%s295] sm:$0xff] %v354
          %v356 = vld [vmem:[#allocation3] sm:$0xff]
          %s357 = scalar_lea.vmem %s295, 8 [#allocation10]
          %358 = vst [vmem:[%s357] sm:$0xff] %v356
        $region52: #{tpu_custom_call.1} parent=31 // pred_fallthru
          _
        %s359 = sand.u32 %s139, 1
        %s360 = scalar_lea.sflag [#allocation6], %s359
        %s361 = sand.u32 %s139, 1
        %s362 = smul.addr %s361, 16
        %s363 = scalar_lea.vmem [#allocation10], %s362
        // Predicated region
        $region53: #{tpu_custom_call.1} parent=31 // pred_check
          %p364 = pneg %p149
        $region54: #{tpu_custom_call.1} parent=31 // pred_check_branch
          %366 = sbr.rel (%p364) target = $region56
        $region55: #{tpu_custom_call.1} parent=31 // pred_region
          %s368 = ssub.s32 256, 256
          %369 = vsyncadd %s360, %s368
          %s370 = smul.addr %s27, 2
          %s371 = smul.addr %s370, 128
          %s372 = scalar_lea.hbm %s3, %s371
          %s373 = sshll.u32 %s363, 4
          %s374 = int_to_ptr.vmem [resolvable:$true] %s373
          %379 = dma.vmem_to_hbm [thread:$0]  %s374, 256, %s372, %s360, 128, 128, 8
        $region56: #{tpu_custom_call.1} parent=31 // pred_fallthru
          _
      $region32: #{tpu_custom_call.1} parent=5 // pred_fallthru
        _
      %p380 = scmp.le.s32.totalorder 2, %s18
      // Predicated region
      $region57: #{tpu_custom_call.1} parent=5 // pred_check
        %p381 = pneg %p380
      $region58: #{tpu_custom_call.1} parent=5 // pred_check_branch
        %383 = sbr.rel (%p381) target = $region60
      $region59: #{tpu_custom_call.1} parent=5 // pred_region
        %s384 = ssub.s32 %s18, 2
        // Predicated region
        $region61: #{tpu_custom_call.1} parent=59 // pred_check
          %p385 = pneg %p155
        $region62: #{tpu_custom_call.1} parent=59 // pred_check_branch
          %387 = sbr.rel (%p385) target = $region64
        $region63: #{tpu_custom_call.1} parent=59 // pred_region
          %s388 = sand.u32 %s140, 1
          %s389 = scalar_lea.sflag [#allocation6], %s388
          %s390 = sand.u32 %s140, 1
          %s391 = smul.addr %s390, 16
          %s392 = scalar_lea.vmem [#allocation10], %s391
          %393 = dma.done %s389, 256
        $region64: #{tpu_custom_call.1} parent=59 // pred_fallthru
          _
      $region60: #{tpu_custom_call.1} parent=5 // pred_fallthru
        _
    $region6: #{tpu_custom_call.1} parent=1 // loop_footer
      %s22 = sadd.s32 1, %s18
    $region7: #{tpu_custom_call.1} parent=1 // loop_footer_branch
      %17 = sbr.rel target = $region3
    $region8: #{tpu_custom_call.1} parent=1 // loop_exit
      _
    %394 = vsyncpa [#allocation5], 1
    %s395 = scalar_lea.sflag [#allocation5], 1
    %396 = vsyncpa %s395, 1
    %397 = vsyncpa [#allocation8], 1
    %s398 = scalar_lea.sflag [#allocation8], 1
    %399 = vsyncpa %s398, 1
    %400 = vsyncpa [#allocation6], 1
    %s401 = scalar_lea.sflag [#allocation6], 1
    %402 = vsyncpa %s401, 1

</llo_original>
